<compile_context>
chip_gen: v6e
topology: v6e:2x2x1
jax: 0.10.0
libtpu: 0.0.40
codegen_flags: <defaults>
</compile_context>

<pallas_src>
import math
from functools import partial

import jax
import jax.numpy as jnp
from jax import lax
from jax.experimental import pallas as pl
from jax.experimental.pallas import tpu as pltpu

_LANES = 128            # lane width (last dim)
_ACC_ROWS = 8           # sublanes -> accumulator / output tile is (8, 128)
_MAX_BLOCK_ROWS = 4096  # 4096 * 128 * 4 B = 2 MiB per f32 input block
_NUM_CORES = 2          # megacore split on v7x; sequential (harmless) on v5e/v6e


def _cdiv(a, b):
    return -(-a // b)


def _fold(v):
    """(block_rows, 128) -> (8, 128) partial sums (VPU-only vreg adds)."""
    return jnp.sum(v.reshape(-1, _ACC_ROWS, _LANES), axis=0)


# ----------------------------- kernels ------------------------------------ #

def _sum_log_kernel(x_ref, o_ref, acc_ref, *, rows, block_rows, inner_steps):
    """Accumulates sum(log(x)) over a (rows, 128) slab (ragged rows masked)."""
    c = pl.program_id(0)          # "parallel" core axis
    k = pl.program_id(1)          # "arbitrary" reduction axis

    @pl.when(k == 0)
    def _():
        acc_ref[...] = jnp.zeros_like(acc_ref)

    row_start = (c * inner_steps + k) * block_rows
    x = x_ref[...].astype(jnp.float32)
    needs_mask = row_start + block_rows > rows

    @pl.when(jnp.logical_not(needs_mask))
    def _():
        acc_ref[...] += _fold(jnp.log(x))

    @pl.when(needs_mask)
    def _():
        row_ids = row_start + lax.broadcasted_iota(jnp.int32, x.shape, 0)
        xm = jnp.where(row_ids < rows, x, 1.0)   # log(1) == 0 -> neutral
        acc_ref[...] += _fold(jnp.log(xm))

    @pl.when(k == pl.num_programs(1) - 1)
    def _():
        o_ref[0] = acc_ref[...]


def _sse_kernel(a_ref, b_ref, o_ref, acc_ref, *, rows, block_rows, inner_steps):
    """Accumulates sum((a - b)^2) over a (rows, 128) slab (ragged rows masked)."""
    c = pl.program_id(0)
    k = pl.program_id(1)

    @pl.when(k == 0)
    def _():
        acc_ref[...] = jnp.zeros_like(acc_ref)

    row_start = (c * inner_steps + k) * block_rows
    d = a_ref[...].astype(jnp.float32) - b_ref[...].astype(jnp.float32)
    needs_mask = row_start + block_rows > rows

    @pl.when(jnp.logical_not(needs_mask))
    def _():
        acc_ref[...] += _fold(d * d)

    @pl.when(needs_mask)
    def _():
        row_ids = row_start + lax.broadcasted_iota(jnp.int32, d.shape, 0)
        dm = jnp.where(row_ids < rows, d, 0.0)   # 0^2 -> neutral
        acc_ref[...] += _fold(dm * dm)

    @pl.when(k == pl.num_programs(1) - 1)
    def _():
        o_ref[0] = acc_ref[...]


# ----------------------------- launch helpers ------------------------------ #

def _block_rows_for(rows):
    # Largest multiple of 8 not exceeding rows, capped at _MAX_BLOCK_ROWS.
    return min(_MAX_BLOCK_ROWS, (rows // _ACC_ROWS) * _ACC_ROWS)


def _launch_reduction(kernel, operands, rows, block_rows):
    total_blocks = _cdiv(rows, block_rows)
    # Don't pay a duplicated (fully masked) block read when there's only one
    # block of work — collapse the parallel axis instead.
    num_cores = _NUM_CORES if total_blocks >= _NUM_CORES else 1
    inner_steps = _cdiv(total_blocks, num_cores)

    def in_idx(c, k):
        g = c * inner_steps + k
        # Clamp so over-provisioned grid cells never request a fully OOB
        # block; the in-kernel row mask zeroes their contribution anyway.
        return (jnp.minimum(g, total_blocks - 1), 0)

    out = pl.pallas_call(
        partial(kernel, rows=rows, block_rows=block_rows,
                inner_steps=inner_steps),
        out_shape=jax.ShapeDtypeStruct((num_cores, _ACC_ROWS, _LANES),
                                       jnp.float32),
        grid_spec=pltpu.PrefetchScalarGridSpec(
            num_scalar_prefetch=0,
            grid=(num_cores, inner_steps),
            in_specs=[pl.BlockSpec((block_rows, _LANES), in_idx)
                      for _ in operands],
            out_specs=pl.BlockSpec((1, _ACC_ROWS, _LANES),
                                   lambda c, k: (c, 0, 0)),
            scratch_shapes=[pltpu.VMEM((_ACC_ROWS, _LANES), jnp.float32)],
        ),
        compiler_params=pltpu.CompilerParams(
            dimension_semantics=("parallel", "arbitrary"),
            vmem_limit_bytes=32 * 1024 * 1024,
        ),
    )(*operands)
    return jnp.sum(out)   # one tiny final cross-lane reduce in the wrapper


def _split_main_tail(flat):
    """Split a flat 1-D array into a copy-free (rows, 128) slab + small tail."""
    n = flat.shape[0]
    rows = n // _LANES
    if rows < _ACC_ROWS:                      # tiny tensor: all plain JAX
        return None, flat
    main_n = rows * _LANES
    if main_n == n:                           # aligned: zero-copy reshape
        return flat.reshape(rows, _LANES), None
    return flat[:main_n].reshape(rows, _LANES), flat[main_n:]


def _sum_log(x):
    """sum(log(x)) over all elements (any shape, native dtype)."""
    flat = jnp.reshape(x, (-1,))
    main, tail = _split_main_tail(flat)
    total = jnp.float32(0.0)
    if main is not None:
        rows = main.shape[0]
        total = _launch_reduction(_sum_log_kernel, (main,), rows,
                                  _block_rows_for(rows))
    if tail is not None:
        total = total + jnp.sum(jnp.log(tail.astype(jnp.float32)))
    return total


def _sum_sq_err(a, b):
    """sum((a - b)^2) over all elements (equal shapes, native dtypes)."""
    fa = jnp.reshape(a, (-1,))
    fb = jnp.reshape(b, (-1,))
    ma, ta = _split_main_tail(fa)
    mb, tb = _split_main_tail(fb)
    total = jnp.float32(0.0)
    if ma is not None:
        rows = ma.shape[0]
        total = _launch_reduction(_sse_kernel, (ma, mb), rows,
                                  _block_rows_for(rows))
    if ta is not None:
        d = ta.astype(jnp.float32) - tb.astype(jnp.float32)
        total = total + jnp.sum(d * d)
    return total


# ----------------------------- public API ---------------------------------- #

def rate_distortion_loss(output, target, lmbda=(0.01,), p=None):
    """JAX/Pallas equivalent of RateDistortionLoss.forward with type='mse'.

    output: dict with 'x_hat' (array like target) and 'likelihoods'
            (dict of arrays). target: [N, C, H, W].
    """
    N, _, H, W = target.shape
    num_pixels = N * H * W
    if p is None:
        p = lmbda[0]

    # bpp: all likelihood tensors fused into one flattened slab -> one launch.
    liks = [jnp.reshape(l, (-1,)) for l in output['likelihoods'].values()]
    lik_flat = liks[0] if len(liks) == 1 else jnp.concatenate(liks)
    bpp_loss = _sum_log(lik_flat) / (-math.log(2) * num_pixels)

    x_hat = output['x_hat']
    mse_loss = _sum_sq_err(x_hat, target) / jnp.float32(x_hat.size)

    loss = p * (255.0 ** 2) * mse_loss + bpp_loss
    # TODO(synk): ms-ssim branch (type='ms_ssim') not implemented; the
    # reference module only exercises the default 'mse' branch.
    return {'bpp_loss': bpp_loss, 'mse_loss': mse_loss, 'loss': loss}


# ----------------------------- demo / check -------------------------------- #

if __name__ == "__main__":
    key = jax.random.PRNGKey(0)
    k1, k2, k3, k4 = jax.random.split(key, 4)

    N, C, H, W = 2, 3, 32, 32
    target = jax.random.uniform(k1, (N, C, H, W), dtype=jnp.float32)
    x_hat = target + 0.05 * jax.random.normal(k2, (N, C, H, W),
                                              dtype=jnp.float32)
    # Entropy-model likelihoods in (0, 1]; sizes chosen to exercise the fused
    # kernel path, the ragged-row mask, and the sub-128 plain-JAX tail.
    lik_y = jax.random.uniform(k3, (N, 32, H // 4, W // 4),
                               dtype=jnp.float32, minval=0.05, maxval=1.0)
    lik_z = jax.random.uniform(k4, (N, 13, H // 8, W // 8),
                               dtype=jnp.float32, minval=0.05, maxval=1.0)

    output = {'x_hat': x_hat, 'likelihoods': {'y': lik_y, 'z': lik_z}}

    out = rate_distortion_loss(output, target, lmbda=(0.01,))
    out = jax.tree_util.tree_map(jax.block_until_ready, out)

    # Reference check in plain JAX (same math as the PyTorch module).
    num_pixels = N * H * W
    ref_bpp = (jnp.sum(jnp.log(lik_y)) + jnp.sum(jnp.log(lik_z))) / (
        -math.log(2) * num_pixels)
    ref_mse = jnp.mean((x_hat - target) ** 2)
    ref_loss = 0.01 * 255.0 ** 2 * ref_mse + ref_bpp

    assert jnp.allclose(out['bpp_loss'], ref_bpp, rtol=1e-5, atol=1e-5)
    assert jnp.allclose(out['mse_loss'], ref_mse, rtol=1e-5, atol=1e-6)
    assert jnp.allclose(out['loss'], ref_loss, rtol=1e-5, atol=1e-5)

    print("KERNEL_OK")
</pallas_src>

<mosaic_0001>
module attributes {stable_mosaic.version = 11 : i64} {
  func.func @_sum_log_kernel(%arg0: i32, %arg1: i32, %arg2: memref<32x128xf32, #tpu.memory_space<vmem>>, %arg3: memref<1x8x128xf32, #tpu.memory_space<vmem>>, %arg4: memref<8x128xf32, #tpu.memory_space<vmem>>) attributes {dimension_semantics = [#tpu.dimension_semantics<parallel>, #tpu.dimension_semantics<arbitrary>], iteration_bounds = array<i64: 2, 1>, scalar_prefetch = 0 : i64, scratch_operands = 1 : i64, tpu.core_type = #tpu.core_type<tc>, window_params = [{transform_indices = @transform_0, window_bounds = array<i64: 32, 128>}, {transform_indices = @transform_1, window_bounds = array<i64: 1, 8, 128>}]} {
    %c0_i32 = arith.constant 0 : i32
    %0 = arith.cmpi eq, %arg1, %c0_i32 : i32
    %1 = arith.extui %0 : i1 to i32
    %c0_i32_0 = arith.constant 0 : i32
    %2 = arith.cmpi ne, %1, %c0_i32_0 : i32
    scf.if %2 {
      %cst = arith.constant 0.000000e+00 : f32
      %17 = vector.broadcast %cst : f32 to vector<8x128xf32>
      %c0_7 = arith.constant 0 : index
      %c0_8 = arith.constant 0 : index
      %18 = vector.load %arg4[%c0_7, %c0_8] : memref<8x128xf32, #tpu.memory_space<vmem>>, vector<8x128xf32>
      tpu.vector_store %arg4[%c0_7, %c0_8], %17 {strides = array<i32>} : memref<8x128xf32, #tpu.memory_space<vmem>>, vector<8x128xf32>,
    } else {
    }
    %c1_i32 = arith.constant 1 : i32
    %3 = arith.muli %arg0, %c1_i32 : i32
    %4 = arith.addi %3, %arg1 : i32
    %c32_i32 = arith.constant 32 : i32
    %5 = arith.muli %4, %c32_i32 : i32
    %c0 = arith.constant 0 : index
    %c0_1 = arith.constant 0 : index
    %6 = vector.load %arg2[%c0, %c0_1] : memref<32x128xf32, #tpu.memory_space<vmem>>, vector<32x128xf32>
    %c32_i32_2 = arith.constant 32 : i32
    %7 = arith.addi %5, %c32_i32_2 : i32
    %c35_i32 = arith.constant 35 : i32
    %8 = arith.cmpi sgt, %7, %c35_i32 : i32
    %true = arith.constant true
    %9 = arith.xori %8, %true : i1
    %10 = arith.extui %9 : i1 to i32
    %c0_i32_3 = arith.constant 0 : i32
    %11 = arith.cmpi ne, %10, %c0_i32_3 : i32
    scf.if %11 {
      %c0_7 = arith.constant 0 : index
      %c0_8 = arith.constant 0 : index
      %17 = vector.load %arg4[%c0_7, %c0_8] : memref<8x128xf32, #tpu.memory_space<vmem>>, vector<8x128xf32>
      %18 = math.log %6 : vector<32x128xf32>
      %19 = vector.shape_cast %18 : vector<32x128xf32> to vector<4x8x128xf32>
      %cst = arith.constant dense<0.000000e+00> : vector<8x128xf32>
      %20 = vector.multi_reduction <add>, %19, %cst [0] : vector<4x8x128xf32> to vector<8x128xf32>
      %21 = arith.addf %17, %20 : vector<8x128xf32>
      %c0_9 = arith.constant 0 : index
      %c0_10 = arith.constant 0 : index
      %22 = vector.load %arg4[%c0_9, %c0_10] : memref<8x128xf32, #tpu.memory_space<vmem>>, vector<8x128xf32>
      tpu.vector_store %arg4[%c0_9, %c0_10], %21 {strides = array<i32>} : memref<8x128xf32, #tpu.memory_space<vmem>>, vector<8x128xf32>,
    } else {
    }
    %12 = arith.extui %8 : i1 to i32
    %c0_i32_4 = arith.constant 0 : i32
    %13 = arith.cmpi ne, %12, %c0_i32_4 : i32
    scf.if %13 {
      %17 = tpu.iota {dimensions = array<i32: 0>} : vector<32x128xi32>
      %18 = vector.broadcast %5 : i32 to vector<32x128xi32>
      %19 = arith.addi %18, %17 : vector<32x128xi32>
      %c35_i32_7 = arith.constant 35 : i32
      %20 = vector.broadcast %c35_i32_7 : i32 to vector<32x128xi32>
      %21 = arith.cmpi slt, %19, %20 : vector<32x128xi32>
      %cst = arith.constant 1.000000e+00 : f32
      %22 = vector.broadcast %cst : f32 to vector<32x128xf32>
      %23 = arith.select %21, %6, %22 : vector<32x128xi1>, vector<32x128xf32>
      %c0_8 = arith.constant 0 : index
      %c0_9 = arith.constant 0 : index
      %24 = vector.load %arg4[%c0_8, %c0_9] : memref<8x128xf32, #tpu.memory_space<vmem>>, vector<8x128xf32>
      %25 = math.log %23 : vector<32x128xf32>
      %26 = vector.shape_cast %25 : vector<32x128xf32> to vector<4x8x128xf32>
      %cst_10 = arith.constant dense<0.000000e+00> : vector<8x128xf32>
      %27 = vector.multi_reduction <add>, %26, %cst_10 [0] : vector<4x8x128xf32> to vector<8x128xf32>
      %28 = arith.addf %24, %27 : vector<8x128xf32>
      %c0_11 = arith.constant 0 : index
      %c0_12 = arith.constant 0 : index
      %29 = vector.load %arg4[%c0_11, %c0_12] : memref<8x128xf32, #tpu.memory_space<vmem>>, vector<8x128xf32>
      tpu.vector_store %arg4[%c0_11, %c0_12], %28 {strides = array<i32>} : memref<8x128xf32, #tpu.memory_space<vmem>>, vector<8x128xf32>,
    } else {
    }
    %c0_i32_5 = arith.constant 0 : i32
    %14 = arith.cmpi eq, %arg1, %c0_i32_5 : i32
    %15 = arith.extui %14 : i1 to i32
    %c0_i32_6 = arith.constant 0 : i32
    %16 = arith.cmpi ne, %15, %c0_i32_6 : i32
    scf.if %16 {
      %c0_7 = arith.constant 0 : index
      %c0_8 = arith.constant 0 : index
      %17 = vector.load %arg4[%c0_7, %c0_8] : memref<8x128xf32, #tpu.memory_space<vmem>>, vector<8x128xf32>
      %c0_9 = arith.constant 0 : index
      %c0_10 = arith.constant 0 : index
      %c0_11 = arith.constant 0 : index
      %18 = vector.load %arg3[%c0_9, %c0_10, %c0_11] : memref<1x8x128xf32, #tpu.memory_space<vmem>>, vector<1x8x128xf32>
      %19 = vector.shape_cast %18 : vector<1x8x128xf32> to vector<8x128xf32>
      %20 = vector.shape_cast %17 : vector<8x128xf32> to vector<1x8x128xf32>
      tpu.vector_store %arg3[%c0_9, %c0_10, %c0_11], %20 {strides = array<i32>} : memref<1x8x128xf32, #tpu.memory_space<vmem>>, vector<1x8x128xf32>,
    } else {
    }
    return
  }
  func.func @transform_0(%arg0: i32, %arg1: i32) -> (i32, i32) {
    %c1_i32 = arith.constant 1 : i32
    %0 = arith.muli %arg0, %c1_i32 : i32
    %1 = arith.addi %0, %arg1 : i32
    %c1_i32_0 = arith.constant 1 : i32
    %2 = arith.minsi %1, %c1_i32_0 : i32
    %c0_i32 = arith.constant 0 : i32
    %c0_i32_1 = arith.constant 0 : i32
    return %2, %c0_i32 : i32, i32
  }
  func.func @transform_1(%arg0: i32, %arg1: i32) -> (i32, i32, i32) {
    %c0_i32 = arith.constant 0 : i32
    %c0_i32_0 = arith.constant 0 : i32
    %c0_i32_1 = arith.constant 0 : i32
    return %arg0, %c0_i32, %c0_i32_0 : i32, i32, i32
  }
}

</mosaic_0001>

<llo_original>
// kernel: tpu_custom_call.1
$region0: #{tpu_custom_call.1}
  #allocation0 [shape = 'u32[]', space=smem, size = 0x4, offset = 0x4, fixed_abs, tag = 'smem constant byte address 0x4 - core index']
  #allocation1 [shape = 'u32[144,128]{1,0:T(1,128)}', space=vmem, size = 0x12000, scoped, tag = 'internal scratch']
  #allocation2 [shape = 'f32[8,128]{1,0:T(8,128)}', space=vmem, size = 0x1000, scoped, tag = 'scratch operand']
  %s0 = inlined_call_operand.hbm [shape: f32[35,128], index: 0, kind: input, shape index: {}]
  %s1 = inlined_call_operand.hbm [shape: f32[2,8,128], index: 1, kind: output, shape index: {}]
  %s2 = sld [smem:[#allocation0]]
  $region57: #{tpu_custom_call.1} parent=0
    _
  %s4 = ssub.s32 1, %s2
  %s5 = scalar_select 0, %s4, %s2
  $region1: #{tpu_custom_call.1} parent=0
    #allocation3 [shape = 'u8[32768]{0}', space=vmem, size = 0x8000, scoped, tag = 'input window, operand 0']
    #allocation4 [shape = 's32[2]{0}', space=sflag, size = 0x8, scoped, tag = 'scoped memory for tpu_custom_call.1']
    #allocation5 [shape = 's32[2]{0}', space=sflag, size = 0x8, scoped, tag = 'scoped memory for tpu_custom_call.1']
    #allocation6 [shape = 'u8[8192]{0}', space=vmem, size = 0x2000, scoped, tag = 'output window, operand 0']
    %6 = vsyncpa [#allocation4], 0
    %s7 = scalar_lea.sflag [#allocation4], 1
    %8 = vsyncpa %s7, 0
    %9 = vsyncpa [#allocation5], 0
    %s10 = scalar_lea.sflag [#allocation5], 1
    %11 = vsyncpa %s10, 0
    loop: start=0, step=1, limit=4
    $region2: #{tpu_custom_call.1} parent=1 // loop_pre_header
      _
    $region3: #{tpu_custom_call.1} parent=1 // loop_header
      %s13 = sphi 0, %s17
      %p14 = scmp.ge.s32.totalorder %s13, 4
      %s20 = sphi 0, %s32
      %s21 = sphi 0, %s28
      %s22 = sphi 0, %s20
      %s23 = sphi 0, %s21
      %s24 = sphi 0, %s22
      %s25 = sphi 0, %s23
      %s41 = sphi 0, %s43
      %s44 = sphi 0, %s41
      %s45 = sphi 0, %s44
      %s61 = sphi 0, %s45
      %s67 = sphi 0, %s69
      %s70 = sphi 0, %s67
      %s71 = sphi 0, %s70
      %s87 = sphi 0, %s71
    $region4: #{tpu_custom_call.1} parent=1 // loop_header_branch
      %16 = sbr.rel (%p14) target = $region8
    $region5: #{tpu_custom_call.1} parent=1 // loop_body
      %s18 = ssub.s32 %s13, 1
      %s19 = ssub.s32 %s13, 2
      %s26 = sadd.s32 1, %s21
      %p27 = scmp.ge.s32.totalorder %s26, 1
      %s28 = scalar_select %p27, 0, %s26
      %s29 = sadd.s32 1, %s20
      %s30 = scalar_select %p27, %s29, %s20
      %p31 = scmp.ge.s32.totalorder %s30, 2
      %s32 = scalar_select %p31, 0, %s30
      %s33 = sadd.s32 %s20, %s21
      %p34 = scmp.lt.s32.totalorder %s33, 1
      %s35 = scalar_select %p34, %s33, 1
      %s36 = sadd.s32 %s32, %s28
      %p37 = scmp.lt.s32.totalorder %s36, 1
      %s38 = scalar_select %p37, %s36, 1
      %s39 = ssub.s32 %s35, %s38
      %p40 = scmp.eq.s32.totalorder %s39, 0
      %s42 = sadd.s32 %s41, 1
      %s43 = scalar_select %p40, %s41, %s42
      %p46 = pneg %p40
      %p47 = scmp.eq.s32.totalorder %s13, 1
      %p48 = por %p46, %p47
      %p49 = scmp.ne.s32.totalorder %s41, %s44
      %p50 = scmp.eq.s32.totalorder %s13, 0
      %p51 = por %p49, %p50
      %p52 = scmp.ne.s32.totalorder %s41, %s44
      %p53 = scmp.eq.s32.totalorder %s18, 1
      %p54 = por %p52, %p53
      %p55 = scmp.ne.s32.totalorder %s44, %s45
      %p56 = scmp.eq.s32.totalorder %s18, 0
      %p57 = por %p55, %p56
      %p58 = scmp.ne.s32.totalorder %s44, %s45
      %p59 = scmp.eq.s32.totalorder %s19, 1
      %p60 = por %p58, %p59
      %p62 = scmp.ne.s32.totalorder %s45, %s61
      %p63 = scmp.eq.s32.totalorder %s19, 0
      %p64 = por %p62, %p63
      %s65 = ssub.s32 %s20, %s32
      %p66 = scmp.eq.s32.totalorder %s65, 0
      %s68 = sadd.s32 %s67, 1
      %s69 = scalar_select %p66, %s67, %s68
      %p72 = pneg %p66
      %p73 = scmp.eq.s32.totalorder %s13, 1
      %p74 = por %p72, %p73
      %p75 = scmp.ne.s32.totalorder %s67, %s70
      %p76 = scmp.eq.s32.totalorder %s13, 0
      %p77 = por %p75, %p76
      %p78 = scmp.ne.s32.totalorder %s67, %s70
      %p79 = scmp.eq.s32.totalorder %s18, 1
      %p80 = por %p78, %p79
      %p81 = scmp.ne.s32.totalorder %s70, %s71
      %p82 = scmp.eq.s32.totalorder %s18, 0
      %p83 = por %p81, %p82
      %p84 = scmp.ne.s32.totalorder %s70, %s71
      %p85 = scmp.eq.s32.totalorder %s19, 1
      %p86 = por %p84, %p85
      %p88 = scmp.ne.s32.totalorder %s71, %s87
      %p89 = scmp.eq.s32.totalorder %s19, 0
      %p90 = por %p88, %p89
      %p91 = scmp.le.s32.totalorder 1, %s13
      %p92 = scmp.lt.s32.totalorder %s13, 3
      %p93 = pnand %p91, %p92
      %p94 = pneg %p93
      // Predicated region
      $region9: #{tpu_custom_call.1} parent=5 // pred_check
        _
      $region10: #{tpu_custom_call.1} parent=5 // pred_check_branch
        %96 = sbr.rel (%p93) target = $region12
      $region11: #{tpu_custom_call.1} parent=5 // pred_region
        %s97 = ssub.s32 %s13, 1
      $region12: #{tpu_custom_call.1} parent=5 // pred_fallthru
        _
      %p98 = scmp.lt.s32.totalorder %s13, 2
      // Predicated region
      $region13: #{tpu_custom_call.1} parent=5 // pred_check
        %p99 = pneg %p98
      $region14: #{tpu_custom_call.1} parent=5 // pred_check_branch
        %101 = sbr.rel (%p99) target = $region16
      $region15: #{tpu_custom_call.1} parent=5 // pred_region
        // Predicated region
        $region17: #{tpu_custom_call.1} parent=15 // pred_check
          %p102 = pneg %p51
        $region18: #{tpu_custom_call.1} parent=15 // pred_check_branch
          %104 = sbr.rel (%p102) target = $region20
        $region19: #{tpu_custom_call.1} parent=15 // pred_region
          %s105 = sand.u32 %s41, 1
          %s106 = scalar_lea.sflag [#allocation4], %s105
          %s107 = sand.u32 %s41, 1
          %s108 = smul.addr %s107, 32
          %s109 = scalar_lea.vmem [#allocation3], %s108
          %s110 = sadd.s32 %s20, %s21
          %p111 = scmp.lt.s32.totalorder %s110, 1
          %s112 = scalar_select %p111, %s110, 1
          %s113 = smul.u32 4, %s112
          %s114 = ssub.s32 5, %s113
          %p115 = scmp.lt.s32.totalorder %s114, 4
          %s116 = scalar_select %p115, %s114, 4
          %s117 = smul.u32 128, %s116
          %s119 = ssub.s32 512, %s117
          %120 = vsyncadd %s106, %s119
          %p121 = scmp.ne.s32.totalorder 0, %s117
          %s122 = smul.addr %s113, 128
          %s123 = scalar_lea.hbm %s0, %s122
          %s124 = smul.u32 8, %s116
          %s125 = sshll.u32 %s109, 4
          %s126 = int_to_ptr.vmem [resolvable:$true] %s125
          %s127 = sshll.u32 %s124, 4
          %131 = dma.hbm_to_vmem [thread:$0]  (%p121), %s123, %s127, %s126, %s106, 128, 128, 8
        $region20: #{tpu_custom_call.1} parent=15 // pred_fallthru
          _
      $region16: #{tpu_custom_call.1} parent=5 // pred_fallthru
        _
      %p132 = scmp.le.s32.totalorder 1, %s13
      %p133 = scmp.lt.s32.totalorder %s13, 3
      %p134 = pnand %p132, %p133
      %p135 = pneg %p134
      // Predicated region
      $region21: #{tpu_custom_call.1} parent=5 // pred_check
        _
      $region22: #{tpu_custom_call.1} parent=5 // pred_check_branch
        %137 = sbr.rel (%p134) target = $region24
      $region23: #{tpu_custom_call.1} parent=5 // pred_region
        %s138 = ssub.s32 %s13, 1
        %s139 = sand.u32 %s44, 1
        %s140 = scalar_lea.sflag [#allocation4], %s139
        %s141 = sand.u32 %s44, 1
        %s142 = smul.addr %s141, 32
        %s143 = scalar_lea.vmem [#allocation3], %s142
        // Predicated region
        $region25: #{tpu_custom_call.1} parent=23 // pred_check
          %p144 = pneg %p57
        $region26: #{tpu_custom_call.1} parent=23 // pred_check_branch
          %146 = sbr.rel (%p144) target = $region28
        $region27: #{tpu_custom_call.1} parent=23 // pred_region
          %147 = dma.done %s140, 512
        $region28: #{tpu_custom_call.1} parent=23 // pred_fallthru
          _
        %s148 = sand.u32 %s44, 1
        %s149 = scalar_lea.sflag [#allocation4], %s148
        %s150 = sand.u32 %s44, 1
        %s151 = smul.addr %s150, 32
        %s152 = scalar_lea.vmem [#allocation3], %s151
        %p153 = pneg %p57
        %p154 = pneg %p54
        %p155 = pneg %p83
        %p156 = pneg %p80
        %s157 = sand.u32 %s70, 1
        %s158 = scalar_lea.sflag [#allocation5], %s157
        %s159 = sand.u32 %s70, 1
        %s160 = smul.addr %s159, 8
        %s161 = scalar_lea.vmem [#allocation6], %s160
        %s162 = sadd.s32 %s22, %s23
        %p163 = scmp.lt.s32.totalorder %s162, 1
        %s164 = scalar_select %p163, %s162, 1
        %s165 = smul.u32 4, %s164
        %s166 = ssub.s32 5, %s165
        %p167 = scmp.lt.s32.totalorder %s166, 4
        %s168 = scalar_select %p167, %s166, 4
        %s169 = smul.u32 128, %s168
        %p170 = scmp.eq.s32.totalorder %s23, 0
        // Predicated region
        $region29: #{tpu_custom_call.1} parent=23 // pred_check
          %p171 = pneg %p170
        $region30: #{tpu_custom_call.1} parent=23 // pred_check_branch
          %173 = sbr.rel (%p171) target = $region32
        $region31: #{tpu_custom_call.1} parent=23 // pred_region
          %174 = vst [vmem:[#allocation2] sm:$0xff] 0.0
        $region32: #{tpu_custom_call.1} parent=23 // pred_fallthru
          _
        %s175 = sadd.s32 %s22, %s23
        %s176 = smul.u32 %s175, 32
        %v177 = vld [vmem:[%s143] sm:$0xff]
        %v178 = vld [vmem:[%s143 + $0x8] sm:$0xff]
        %v179 = vld [vmem:[%s143 + $0x10] sm:$0xff]
        %v180 = vld [vmem:[%s143 + $0x18] sm:$0xff]
        %s181 = sadd.s32 %s176, 32
        %p182 = scmp.gt.s32.totalorder %s181, 35
        %p183 = scmp.le.s32.totalorder %s181, 35
        // Predicated region
        $region33: #{tpu_custom_call.1} parent=23 // pred_check
          %p184 = pneg %p183
        $region34: #{tpu_custom_call.1} parent=23 // pred_check_branch
          %186 = sbr.rel (%p184) target = $region36
        $region35: #{tpu_custom_call.1} parent=23 // pred_region
          %v187 = vld [vmem:[#allocation2] sm:$0xff]
          %v188 = vlog2.pop %v177
          %v189 = vmul.f32 %v188, 0.6931472
          %v190 = vlog2.pop %v178
          %v191 = vmul.f32 %v190, 0.6931472
          %v192 = vlog2.pop %v179
          %v193 = vmul.f32 %v192, 0.6931472
          %v194 = vlog2.pop %v180
          %v195 = vmul.f32 %v194, 0.6931472
          %v196 = vadd.f32 %v189, %v191
          %v197 = vadd.f32 %v196, %v193
          %v198 = vadd.f32 %v197, %v195
          %v199 = vadd.f32 %v187, %v198
          %200 = vst [vmem:[#allocation2] sm:$0xff] %v199
        $region36: #{tpu_custom_call.1} parent=23 // pred_fallthru
          _
        // Predicated region
        $region37: #{tpu_custom_call.1} parent=23 // pred_check
          %p201 = pneg %p182
        $region38: #{tpu_custom_call.1} parent=23 // pred_check_branch
          %203 = sbr.rel (%p201) target = $region40
        $region39: #{tpu_custom_call.1} parent=23 // pred_region
          %v204 = vlaneseq
          %v205 = vshrl.u32 %v204, 7
          %v206 = vadd.s32 %v205, 8
          %v207 = vadd.s32 %v205, 16
          %v208 = vadd.s32 %v205, 24
          %v209 = vstv %s176
          %v210 = vadd.s32 %v209, %v205
          %v211 = vadd.s32 %v209, %v206
          %v212 = vadd.s32 %v209, %v207
          %v213 = vadd.s32 %v209, %v208
          %vm214 = vcmp.lt.s32.totalorder %v210, 35
          %vm215 = vcmp.lt.s32.totalorder %v211, 35
          %vm216 = vcmp.lt.s32.totalorder %v212, 35
          %vm217 = vcmp.lt.s32.totalorder %v213, 35
          %v218 = vsel %vm214, %v177, 1.0
          %v219 = vsel %vm215, %v178, 1.0
          %v220 = vsel %vm216, %v179, 1.0
          %v221 = vsel %vm217, %v180, 1.0
          %v222 = vld [vmem:[#allocation2] sm:$0xff]
          %v223 = vlog2.pop %v218
          %v224 = vmul.f32 %v223, 0.6931472
          %v225 = vlog2.pop %v219
          %v226 = vmul.f32 %v225, 0.6931472
          %v227 = vlog2.pop %v220
          %v228 = vmul.f32 %v227, 0.6931472
          %v229 = vlog2.pop %v221
          %v230 = vmul.f32 %v229, 0.6931472
          %v231 = vadd.f32 %v224, %v226
          %v232 = vadd.f32 %v231, %v228
          %v233 = vadd.f32 %v232, %v230
          %v234 = vadd.f32 %v222, %v233
          %235 = vst [vmem:[#allocation2] sm:$0xff] %v234
        $region40: #{tpu_custom_call.1} parent=23 // pred_fallthru
          _
        // Predicated region
        $region41: #{tpu_custom_call.1} parent=23 // pred_check
          %p236 = pneg %p170
        $region42: #{tpu_custom_call.1} parent=23 // pred_check_branch
          %238 = sbr.rel (%p236) target = $region44
        $region43: #{tpu_custom_call.1} parent=23 // pred_region
          %v239 = vld [vmem:[#allocation2] sm:$0xff]
          %240 = vst [vmem:[%s161] sm:$0xff] %v239
        $region44: #{tpu_custom_call.1} parent=23 // pred_fallthru
          _
        %s241 = sand.u32 %s70, 1
        %s242 = scalar_lea.sflag [#allocation5], %s241
        %s243 = sand.u32 %s70, 1
        %s244 = smul.addr %s243, 8
        %s245 = scalar_lea.vmem [#allocation6], %s244
        // Predicated region
        $region45: #{tpu_custom_call.1} parent=23 // pred_check
          %p246 = pneg %p80
        $region46: #{tpu_custom_call.1} parent=23 // pred_check_branch
          %248 = sbr.rel (%p246) target = $region48
        $region47: #{tpu_custom_call.1} parent=23 // pred_region
          %s250 = ssub.s32 128, 128
          %251 = vsyncadd %s242, %s250
          %s252 = smul.addr %s22, 128
          %s253 = scalar_lea.hbm %s1, %s252
          %s255 = sshll.u32 %s245, 4
          %s256 = int_to_ptr.vmem [resolvable:$true] %s255
          %258 = dma.vmem_to_hbm [thread:$0]  %s256, 128, %s253, %s242
        $region48: #{tpu_custom_call.1} parent=23 // pred_fallthru
          _
      $region24: #{tpu_custom_call.1} parent=5 // pred_fallthru
        _
      %p259 = scmp.le.s32.totalorder 2, %s13
      // Predicated region
      $region49: #{tpu_custom_call.1} parent=5 // pred_check
        %p260 = pneg %p259
      $region50: #{tpu_custom_call.1} parent=5 // pred_check_branch
        %262 = sbr.rel (%p260) target = $region52
      $region51: #{tpu_custom_call.1} parent=5 // pred_region
        %s263 = ssub.s32 %s13, 2
        // Predicated region
        $region53: #{tpu_custom_call.1} parent=51 // pred_check
          %p264 = pneg %p86
        $region54: #{tpu_custom_call.1} parent=51 // pred_check_branch
          %266 = sbr.rel (%p264) target = $region56
        $region55: #{tpu_custom_call.1} parent=51 // pred_region
          %s267 = sand.u32 %s71, 1
          %s268 = scalar_lea.sflag [#allocation5], %s267
          %s269 = sand.u32 %s71, 1
          %s270 = smul.addr %s269, 8
          %s271 = scalar_lea.vmem [#allocation6], %s270
          %272 = dma.done %s268, 128
        $region56: #{tpu_custom_call.1} parent=51 // pred_fallthru
          _
      $region52: #{tpu_custom_call.1} parent=5 // pred_fallthru
        _
    $region6: #{tpu_custom_call.1} parent=1 // loop_footer
      %s17 = sadd.s32 1, %s13
    $region7: #{tpu_custom_call.1} parent=1 // loop_footer_branch
      %12 = sbr.rel target = $region3
    $region8: #{tpu_custom_call.1} parent=1 // loop_exit
      _
    %273 = vsyncpa [#allocation4], 1
    %s274 = scalar_lea.sflag [#allocation4], 1
    %275 = vsyncpa %s274, 1
    %276 = vsyncpa [#allocation5], 1
    %s277 = scalar_lea.sflag [#allocation5], 1
    %278 = vsyncpa %s277, 1

</llo_original>
